<compile_context>
chip_gen: v5e
topology: v5e:2x2
jax: 0.10.0
libtpu: 0.0.40
codegen_flags: <defaults>
</compile_context>

<pallas_src>
import jax
import jax.numpy as jnp
from jax.experimental import pallas as pl
from jax.experimental.pallas import tpu as pltpu


# -----------------------------------------------------------------------------
# Kernel: whole Transformer forward for one [TB, pack*dim] packed batch tile.
# Weights/biases are full-array VMEM blocks (resident across grid steps).
# -----------------------------------------------------------------------------
def transformer_kernel(rep_ref, attr_ref,
                       wa1_ref, ba1_ref, wa2_ref, ba2_ref,
                       wo1r_ref, wo1a_ref, bo1_ref, wo2_ref, bo2_ref,
                       out_ref):
    attr = attr_ref[...]                      # [TB, pack*attr_dim], storage dtype
    rep = rep_ref[...]                        # [TB, pack*rep_dim],  storage dtype

    # ---- fc_attention MLP: Linear -> ReLU -> Linear (f32 accumulate) --------
    h = (jnp.dot(attr, wa1_ref[...], preferred_element_type=jnp.float32)
         + ba1_ref[...])
    h = jnp.maximum(h, 0.0)
    att = (jnp.dot(h.astype(wa2_ref.dtype), wa2_ref[...],
                   preferred_element_type=jnp.float32)
           + ba2_ref[...])
    att = jax.nn.sigmoid(att)                 # f32, EUP path

    # ---- gated residual: rep = attention * rep + rep (f32 elementwise) ------
    rep_f = rep.astype(jnp.float32)
    rep_g = att * rep_f + rep_f               # [TB, pack*rep_dim], f32

    # ---- fc_out MLP on cat([rep_g, attr], dim=1): split weights, no concat --
    h2 = (jnp.dot(rep_g.astype(wo1r_ref.dtype), wo1r_ref[...],
                  preferred_element_type=jnp.float32)
          + jnp.dot(attr, wo1a_ref[...], preferred_element_type=jnp.float32)
          + bo1_ref[...])
    h2 = jnp.maximum(h2, 0.0)
    out = (jnp.dot(h2.astype(wo2_ref.dtype), wo2_ref[...],
                   preferred_element_type=jnp.float32)
           + bo2_ref[...])

    out_ref[...] = out.astype(out_ref.dtype)


def _round_up(x, m):
    return ((x + m - 1) // m) * m


# -----------------------------------------------------------------------------
# Weight packing: block-diagonal replication so `pack` samples share a vreg.
# Built once per parameter set (outside the kernel / outside the hot loop).
# -----------------------------------------------------------------------------
def pack_params(params, pack):
    def bd(w):        # [in, out] -> block-diag [pack*in, pack*out]
        return jnp.kron(jnp.eye(pack, dtype=w.dtype), w)

    def tile_b(b):    # [1, out] -> [1, pack*out]
        return jnp.tile(b, (1, pack))

    rep_dim = params["wa2"].shape[1]
    wo1 = params["wo1"]
    wo1_rep, wo1_attr = wo1[:rep_dim], wo1[rep_dim:]
    return {
        "wa1": bd(params["wa1"]), "ba1": tile_b(params["ba1"]),
        "wa2": bd(params["wa2"]), "ba2": tile_b(params["ba2"]),
        "wo1r": bd(wo1_rep), "wo1a": bd(wo1_attr), "bo1": tile_b(params["bo1"]),
        "wo2": bd(params["wo2"]), "bo2": tile_b(params["bo2"]),
    }


def transformer_forward(rep, v_attr, packed_params, *, pack=4, block_b=1024):
    """Batch-gridded pallas_call on the lane-packed [B/pack, pack*dim] view."""
    B, rep_dim = rep.shape
    attr_dim = v_attr.shape[1]

    # Tiny pad to a multiple of `pack` only when strictly needed (B % pack != 0).
    Bp = _round_up(B, pack)
    if Bp != B:
        pad = Bp - B
        rep = jnp.pad(rep, ((0, pad), (0, 0)))
        v_attr = jnp.pad(v_attr, ((0, pad), (0, 0)))

    n = Bp // pack
    rep_pk = rep.reshape(n, pack * rep_dim)        # contiguous -> free reshape
    attr_pk = v_attr.reshape(n, pack * attr_dim)

    # Batch tile (packed rows): multiple of 16 sublanes (covers f32 & bf16
    # tilings), capped at block_b, and capped so the grid has >= 2 steps
    # whenever possible (lets "parallel" shard across v7x's two TensorCores).
    sub = 16
    tb = min(block_b, _round_up(pl.cdiv(n, 2), sub))
    if tb >= n:
        tb = n                                     # single full-array block
    grid = (pl.cdiv(n, tb),)                       # last block masked by Pallas

    weights = (packed_params["wa1"], packed_params["ba1"],
               packed_params["wa2"], packed_params["ba2"],
               packed_params["wo1r"], packed_params["wo1a"],
               packed_params["bo1"],
               packed_params["wo2"], packed_params["bo2"])

    def batch_spec(d):
        return pl.BlockSpec((tb, d), lambda i: (i, 0))

    def resident_spec(arr):
        # Full-array block, constant index -> loaded once, kept in VMEM.
        return pl.BlockSpec(arr.shape, lambda i: (0, 0))

    mats = (packed_params["wa1"], packed_params["wa2"], packed_params["wo1r"],
            packed_params["wo1a"], packed_params["wo2"])
    flops = 2 * n * sum(w.shape[0] * w.shape[1] for w in mats)
    bytes_accessed = (rep_pk.size * rep_pk.dtype.itemsize
                      + attr_pk.size * attr_pk.dtype.itemsize
                      + sum(w.size * w.dtype.itemsize for w in weights)
                      + n * pack * rep_dim * rep.dtype.itemsize)
    cost = pl.CostEstimate(flops=flops,
                           transcendentals=n * pack * rep_dim,   # sigmoid
                           bytes_accessed=bytes_accessed)

    out_pk = pl.pallas_call(
        transformer_kernel,
        out_shape=jax.ShapeDtypeStruct((n, pack * rep_dim), rep.dtype),
        grid=grid,
        in_specs=[batch_spec(pack * rep_dim), batch_spec(pack * attr_dim)]
                 + [resident_spec(w) for w in weights],
        out_specs=pl.BlockSpec((tb, pack * rep_dim), lambda i: (i, 0)),
        compiler_params=pltpu.CompilerParams(
            dimension_semantics=("parallel",)),
        cost_estimate=cost,
    )(rep_pk, attr_pk, *weights)

    out = out_pk.reshape(Bp, rep_dim)
    return out[:B] if Bp != B else out


# -----------------------------------------------------------------------------
# Deterministic parameter construction (synthetic weights, no checkpoint).
# Weights stored pre-transposed as [in_features, out_features]; biases in f32.
# -----------------------------------------------------------------------------
def init_params(key, attr_emb_dim, rep_dim, hid_att, hid_comp,
                dtype=jnp.float32):
    ks = jax.random.split(key, 8)

    def w(k, shape, fan_in):
        return (jax.random.normal(k, shape, jnp.float32)
                / jnp.sqrt(jnp.float32(fan_in))).astype(dtype)

    def b(k, shape, fan_in):
        return (jax.random.normal(k, shape, jnp.float32)
                / jnp.sqrt(jnp.float32(fan_in))).astype(jnp.float32)

    in_dim = rep_dim + attr_emb_dim
    return {
        # fc_attention: Linear(attr_emb, hid_att) -> ReLU -> Linear(hid_att, rep_dim)
        "wa1": w(ks[0], (attr_emb_dim, hid_att), attr_emb_dim),
        "ba1": b(ks[1], (1, hid_att), attr_emb_dim),
        "wa2": w(ks[2], (hid_att, rep_dim), hid_att),
        "ba2": b(ks[3], (1, rep_dim), hid_att),
        # fc_out: Linear(rep_dim+attr_emb, hid_comp) -> ReLU -> Linear(hid_comp, rep_dim)
        "wo1": w(ks[4], (in_dim, hid_comp), in_dim),
        "bo1": b(ks[5], (1, hid_comp), in_dim),
        "wo2": w(ks[6], (hid_comp, rep_dim), hid_comp),
        "bo2": b(ks[7], (1, rep_dim), hid_comp),
    }


def reference_forward(rep, v_attr, params):
    """Pure-JAX f32 reference mirroring the PyTorch module."""
    rep = rep.astype(jnp.float32)
    v_attr = v_attr.astype(jnp.float32)
    wa1 = params["wa1"].astype(jnp.float32)
    wa2 = params["wa2"].astype(jnp.float32)
    wo1 = params["wo1"].astype(jnp.float32)
    wo2 = params["wo2"].astype(jnp.float32)

    h = jnp.maximum(v_attr @ wa1 + params["ba1"], 0.0)
    att = jax.nn.sigmoid(h @ wa2 + params["ba2"])
    rep_g = att * rep + rep
    hidden = jnp.concatenate([rep_g, v_attr], axis=1)
    h2 = jnp.maximum(hidden @ wo1 + params["bo1"], 0.0)
    return h2 @ wo2 + params["bo2"]


if __name__ == "__main__":
    # Shapes consistent with the module's forward:
    #   rep: [batch, rep_dim], v_attr: [batch, attr_emb_dim]
    attr_emb_dim = 32
    rep_dim = 32
    hid_att = 32      # args.fc_att = [32]
    hid_comp = 32     # args.fc_compress = [32]
    PACK = 4          # 4 x 32 = 128 lanes per vreg

    key = jax.random.PRNGKey(0)
    k_rep, k_attr, k_par = jax.random.split(key, 3)
    params_f32 = init_params(k_par, attr_emb_dim, rep_dim, hid_att, hid_comp,
                             dtype=jnp.float32)
    packed_f32 = pack_params(params_f32, PACK)

    # --- Run 1: small batch, f32, single full block (tight correctness check) -
    batch = 8
    rep = jax.random.normal(k_rep, (batch, rep_dim), jnp.float32)
    v_attr = jax.random.normal(k_attr, (batch, attr_emb_dim), jnp.float32)
    out = jax.block_until_ready(transformer_forward(rep, v_attr, packed_f32,
                                                    pack=PACK))
    ref = reference_forward(rep, v_attr, params_f32)
    assert out.shape == (batch, rep_dim), out.shape
    assert jnp.allclose(out, ref, atol=1e-5, rtol=1e-5), "f32 small-batch mismatch"

    # --- Run 2: batch % 4 != 0, f32 -> pack pad + 2 grid steps + masked tail --
    batch2 = 301
    rep2 = jax.random.normal(jax.random.PRNGKey(1), (batch2, rep_dim), jnp.float32)
    attr2 = jax.random.normal(jax.random.PRNGKey(2), (batch2, attr_emb_dim), jnp.float32)
    out2 = jax.block_until_ready(transformer_forward(rep2, attr2, packed_f32,
                                                     pack=PACK))
    ref2 = reference_forward(rep2, attr2, params_f32)
    assert out2.shape == (batch2, rep_dim), out2.shape
    assert jnp.allclose(out2, ref2, atol=1e-4, rtol=1e-4), "f32 gridded mismatch"

    # --- Run 3: bf16 storage (halves DMA bytes), f32 accumulation in-kernel ---
    params_bf16 = jax.tree_util.tree_map(
        lambda a: a.astype(jnp.bfloat16)
        if a.dtype == jnp.float32 and a.shape[0] > 1 else a,
        params_f32)
    packed_bf16 = pack_params(params_bf16, PACK)
    batch3 = 300
    rep3 = jax.random.normal(jax.random.PRNGKey(3), (batch3, rep_dim), jnp.float32)
    attr3 = jax.random.normal(jax.random.PRNGKey(4), (batch3, attr_emb_dim), jnp.float32)
    rep_bf = rep3.astype(jnp.bfloat16)
    attr_bf = attr3.astype(jnp.bfloat16)
    out_bf = jax.block_until_ready(transformer_forward(rep_bf, attr_bf, packed_bf16,
                                                       pack=PACK))
    ref_bf = reference_forward(rep_bf, attr_bf, params_bf16)
    assert out_bf.shape == (batch3, rep_dim), out_bf.shape
    assert jnp.allclose(out_bf.astype(jnp.float32), ref_bf, atol=0.1, rtol=0.1), \
        "bf16 gridded mismatch"

    print("KERNEL_OK")
</pallas_src>

<mosaic_0001>
module attributes {stable_mosaic.version = 11 : i64} {
  func.func @transformer_kernel(%arg0: i32, %arg1: memref<2x128xf32, #tpu.memory_space<vmem>>, %arg2: memref<2x128xf32, #tpu.memory_space<vmem>>, %arg3: memref<128x128xf32, #tpu.memory_space<vmem>>, %arg4: memref<1x128xf32, #tpu.memory_space<vmem>>, %arg5: memref<128x128xf32, #tpu.memory_space<vmem>>, %arg6: memref<1x128xf32, #tpu.memory_space<vmem>>, %arg7: memref<128x128xf32, #tpu.memory_space<vmem>>, %arg8: memref<128x128xf32, #tpu.memory_space<vmem>>, %arg9: memref<1x128xf32, #tpu.memory_space<vmem>>, %arg10: memref<128x128xf32, #tpu.memory_space<vmem>>, %arg11: memref<1x128xf32, #tpu.memory_space<vmem>>, %arg12: memref<2x128xf32, #tpu.memory_space<vmem>>) attributes {dimension_semantics = [#tpu.dimension_semantics<parallel>], iteration_bounds = array<i64: 1>, scalar_prefetch = 0 : i64, scratch_operands = 0 : i64, tpu.core_type = #tpu.core_type<tc>, window_params = [{transform_indices = @transform_0, window_bounds = array<i64: 2, 128>}, {transform_indices = @transform_1, window_bounds = array<i64: 2, 128>}, {pipeline_mode = #tpu.pipeline_mode<synchronous>, transform_indices = @transform_2, window_bounds = array<i64: 128, 128>}, {pipeline_mode = #tpu.pipeline_mode<synchronous>, transform_indices = @transform_3, window_bounds = array<i64: 1, 128>}, {pipeline_mode = #tpu.pipeline_mode<synchronous>, transform_indices = @transform_4, window_bounds = array<i64: 128, 128>}, {pipeline_mode = #tpu.pipeline_mode<synchronous>, transform_indices = @transform_5, window_bounds = array<i64: 1, 128>}, {pipeline_mode = #tpu.pipeline_mode<synchronous>, transform_indices = @transform_6, window_bounds = array<i64: 128, 128>}, {pipeline_mode = #tpu.pipeline_mode<synchronous>, transform_indices = @transform_7, window_bounds = array<i64: 128, 128>}, {pipeline_mode = #tpu.pipeline_mode<synchronous>, transform_indices = @transform_8, window_bounds = array<i64: 1, 128>}, {pipeline_mode = #tpu.pipeline_mode<synchronous>, transform_indices = @transform_9, window_bounds = array<i64: 128, 128>}, {pipeline_mode = #tpu.pipeline_mode<synchronous>, transform_indices = @transform_10, window_bounds = array<i64: 1, 128>}, {transform_indices = @transform_11, window_bounds = array<i64: 2, 128>}]} {
    %c0 = arith.constant 0 : index
    %c0_0 = arith.constant 0 : index
    %0 = vector.load %arg2[%c0, %c0_0] : memref<2x128xf32, #tpu.memory_space<vmem>>, vector<2x128xf32>
    %c0_1 = arith.constant 0 : index
    %c0_2 = arith.constant 0 : index
    %1 = vector.load %arg1[%c0_1, %c0_2] : memref<2x128xf32, #tpu.memory_space<vmem>>, vector<2x128xf32>
    %c0_3 = arith.constant 0 : index
    %c0_4 = arith.constant 0 : index
    %2 = vector.load %arg3[%c0_3, %c0_4] : memref<128x128xf32, #tpu.memory_space<vmem>>, vector<128x128xf32>
    %cst = arith.constant dense<0.000000e+00> : vector<2x128xf32>
    %3 = tpu.matmul %0, %2, %cst {dimension_numbers = #tpu.dot_dimension_numbers<[1], [0], [0], [1], [0, 0, 1, 1], [], []>} : vector<2x128xf32>, vector<128x128xf32>, vector<2x128xf32> -> vector<2x128xf32>
    %c0_5 = arith.constant 0 : index
    %c0_6 = arith.constant 0 : index
    %4 = vector.load %arg4[%c0_5, %c0_6] : memref<1x128xf32, #tpu.memory_space<vmem>>, vector<1x128xf32>
    %5 = vector.broadcast %4 : vector<1x128xf32> to vector<2x128xf32>
    %6 = arith.addf %3, %5 : vector<2x128xf32>
    %cst_7 = arith.constant 0.000000e+00 : f32
    %7 = vector.broadcast %cst_7 : f32 to vector<2x128xf32>
    %8 = arith.maximumf %6, %7 : vector<2x128xf32>
    %c0_8 = arith.constant 0 : index
    %c0_9 = arith.constant 0 : index
    %9 = vector.load %arg5[%c0_8, %c0_9] : memref<128x128xf32, #tpu.memory_space<vmem>>, vector<128x128xf32>
    %cst_10 = arith.constant dense<0.000000e+00> : vector<2x128xf32>
    %10 = tpu.matmul %8, %9, %cst_10 {dimension_numbers = #tpu.dot_dimension_numbers<[1], [0], [0], [1], [0, 0, 1, 1], [], []>} : vector<2x128xf32>, vector<128x128xf32>, vector<2x128xf32> -> vector<2x128xf32>
    %c0_11 = arith.constant 0 : index
    %c0_12 = arith.constant 0 : index
    %11 = vector.load %arg6[%c0_11, %c0_12] : memref<1x128xf32, #tpu.memory_space<vmem>>, vector<1x128xf32>
    %12 = vector.broadcast %11 : vector<1x128xf32> to vector<2x128xf32>
    %13 = arith.addf %10, %12 : vector<2x128xf32>
    %14 = arith.negf %13 : vector<2x128xf32>
    %15 = math.exp %14 : vector<2x128xf32>
    %cst_13 = arith.constant 1.000000e+00 : f32
    %16 = vector.broadcast %cst_13 : f32 to vector<2x128xf32>
    %17 = arith.addf %16, %15 : vector<2x128xf32>
    %18 = arith.divf %16, %17 : vector<2x128xf32>
    %19 = arith.mulf %18, %1 : vector<2x128xf32>
    %20 = arith.addf %19, %1 : vector<2x128xf32>
    %c0_14 = arith.constant 0 : index
    %c0_15 = arith.constant 0 : index
    %21 = vector.load %arg7[%c0_14, %c0_15] : memref<128x128xf32, #tpu.memory_space<vmem>>, vector<128x128xf32>
    %cst_16 = arith.constant dense<0.000000e+00> : vector<2x128xf32>
    %22 = tpu.matmul %20, %21, %cst_16 {dimension_numbers = #tpu.dot_dimension_numbers<[1], [0], [0], [1], [0, 0, 1, 1], [], []>} : vector<2x128xf32>, vector<128x128xf32>, vector<2x128xf32> -> vector<2x128xf32>
    %c0_17 = arith.constant 0 : index
    %c0_18 = arith.constant 0 : index
    %23 = vector.load %arg8[%c0_17, %c0_18] : memref<128x128xf32, #tpu.memory_space<vmem>>, vector<128x128xf32>
    %cst_19 = arith.constant dense<0.000000e+00> : vector<2x128xf32>
    %24 = tpu.matmul %0, %23, %cst_19 {dimension_numbers = #tpu.dot_dimension_numbers<[1], [0], [0], [1], [0, 0, 1, 1], [], []>} : vector<2x128xf32>, vector<128x128xf32>, vector<2x128xf32> -> vector<2x128xf32>
    %25 = arith.addf %22, %24 : vector<2x128xf32>
    %c0_20 = arith.constant 0 : index
    %c0_21 = arith.constant 0 : index
    %26 = vector.load %arg9[%c0_20, %c0_21] : memref<1x128xf32, #tpu.memory_space<vmem>>, vector<1x128xf32>
    %27 = vector.broadcast %26 : vector<1x128xf32> to vector<2x128xf32>
    %28 = arith.addf %25, %27 : vector<2x128xf32>
    %cst_22 = arith.constant 0.000000e+00 : f32
    %29 = vector.broadcast %cst_22 : f32 to vector<2x128xf32>
    %30 = arith.maximumf %28, %29 : vector<2x128xf32>
    %c0_23 = arith.constant 0 : index
    %c0_24 = arith.constant 0 : index
    %31 = vector.load %arg10[%c0_23, %c0_24] : memref<128x128xf32, #tpu.memory_space<vmem>>, vector<128x128xf32>
    %cst_25 = arith.constant dense<0.000000e+00> : vector<2x128xf32>
    %32 = tpu.matmul %30, %31, %cst_25 {dimension_numbers = #tpu.dot_dimension_numbers<[1], [0], [0], [1], [0, 0, 1, 1], [], []>} : vector<2x128xf32>, vector<128x128xf32>, vector<2x128xf32> -> vector<2x128xf32>
    %c0_26 = arith.constant 0 : index
    %c0_27 = arith.constant 0 : index
    %33 = vector.load %arg11[%c0_26, %c0_27] : memref<1x128xf32, #tpu.memory_space<vmem>>, vector<1x128xf32>
    %34 = vector.broadcast %33 : vector<1x128xf32> to vector<2x128xf32>
    %35 = arith.addf %32, %34 : vector<2x128xf32>
    %c0_28 = arith.constant 0 : index
    %c0_29 = arith.constant 0 : index
    %36 = vector.load %arg12[%c0_28, %c0_29] : memref<2x128xf32, #tpu.memory_space<vmem>>, vector<2x128xf32>
    tpu.vector_store %arg12[%c0_28, %c0_29], %35 {strides = array<i32>} : memref<2x128xf32, #tpu.memory_space<vmem>>, vector<2x128xf32>,
    return
  }
  func.func @transform_0(%arg0: i32) -> (i32, i32) {
    %c0_i32 = arith.constant 0 : i32
    %c0_i32_0 = arith.constant 0 : i32
    return %arg0, %c0_i32 : i32, i32
  }
  func.func @transform_1(%arg0: i32) -> (i32, i32) {
    %c0_i32 = arith.constant 0 : i32
    %c0_i32_0 = arith.constant 0 : i32
    return %arg0, %c0_i32 : i32, i32
  }
  func.func @transform_2(%arg0: i32) -> (i32, i32) {
    %c0_i32 = arith.constant 0 : i32
    %c0_i32_0 = arith.constant 0 : i32
    %c0_i32_1 = arith.constant 0 : i32
    return %c0_i32, %c0_i32_0 : i32, i32
  }
  func.func @transform_3(%arg0: i32) -> (i32, i32) {
    %c0_i32 = arith.constant 0 : i32
    %c0_i32_0 = arith.constant 0 : i32
    %c0_i32_1 = arith.constant 0 : i32
    return %c0_i32, %c0_i32_0 : i32, i32
  }
  func.func @transform_4(%arg0: i32) -> (i32, i32) {
    %c0_i32 = arith.constant 0 : i32
    %c0_i32_0 = arith.constant 0 : i32
    %c0_i32_1 = arith.constant 0 : i32
    return %c0_i32, %c0_i32_0 : i32, i32
  }
  func.func @transform_5(%arg0: i32) -> (i32, i32) {
    %c0_i32 = arith.constant 0 : i32
    %c0_i32_0 = arith.constant 0 : i32
    %c0_i32_1 = arith.constant 0 : i32
    return %c0_i32, %c0_i32_0 : i32, i32
  }
  func.func @transform_6(%arg0: i32) -> (i32, i32) {
    %c0_i32 = arith.constant 0 : i32
    %c0_i32_0 = arith.constant 0 : i32
    %c0_i32_1 = arith.constant 0 : i32
    return %c0_i32, %c0_i32_0 : i32, i32
  }
  func.func @transform_7(%arg0: i32) -> (i32, i32) {
    %c0_i32 = arith.constant 0 : i32
    %c0_i32_0 = arith.constant 0 : i32
    %c0_i32_1 = arith.constant 0 : i32
    return %c0_i32, %c0_i32_0 : i32, i32
  }
  func.func @transform_8(%arg0: i32) -> (i32, i32) {
    %c0_i32 = arith.constant 0 : i32
    %c0_i32_0 = arith.constant 0 : i32
    %c0_i32_1 = arith.constant 0 : i32
    return %c0_i32, %c0_i32_0 : i32, i32
  }
  func.func @transform_9(%arg0: i32) -> (i32, i32) {
    %c0_i32 = arith.constant 0 : i32
    %c0_i32_0 = arith.constant 0 : i32
    %c0_i32_1 = arith.constant 0 : i32
    return %c0_i32, %c0_i32_0 : i32, i32
  }
  func.func @transform_10(%arg0: i32) -> (i32, i32) {
    %c0_i32 = arith.constant 0 : i32
    %c0_i32_0 = arith.constant 0 : i32
    %c0_i32_1 = arith.constant 0 : i32
    return %c0_i32, %c0_i32_0 : i32, i32
  }
  func.func @transform_11(%arg0: i32) -> (i32, i32) {
    %c0_i32 = arith.constant 0 : i32
    %c0_i32_0 = arith.constant 0 : i32
    return %arg0, %c0_i32 : i32, i32
  }
}

</mosaic_0001>

<llo_original>
// kernel: tpu_custom_call.1
$region0: #{tpu_custom_call.1}
  #allocation0 [shape = 'u32[]', space=smem, size = 0x4, offset = 0x4, fixed_abs, tag = 'smem constant byte address 0x4 - core index']
  #allocation1 [shape = 'u32[72,128]{1,0:T(1,128)}', space=vmem, size = 0x9000, scoped, tag = 'internal scratch']
  %s0 = inlined_call_operand.hbm [shape: f32[2,128], index: 0, kind: input, shape index: {}]
  %s1 = inlined_call_operand.hbm [shape: f32[2,128], index: 1, kind: input, shape index: {}]
  %s2 = inlined_call_operand.hbm [shape: f32[128,128], index: 2, kind: input, shape index: {}]
  %s3 = inlined_call_operand.vmem [shape: f32[1,128], index: 3, kind: input, shape index: {}]
  %s4 = inlined_call_operand.hbm [shape: f32[128,128], index: 4, kind: input, shape index: {}]
  %s5 = inlined_call_operand.vmem [shape: f32[1,128], index: 5, kind: input, shape index: {}]
  %s6 = inlined_call_operand.hbm [shape: f32[128,128], index: 6, kind: input, shape index: {}]
  %s7 = inlined_call_operand.hbm [shape: f32[128,128], index: 7, kind: input, shape index: {}]
  %s8 = inlined_call_operand.vmem [shape: f32[1,128], index: 8, kind: input, shape index: {}]
  %s9 = inlined_call_operand.hbm [shape: f32[128,128], index: 9, kind: input, shape index: {}]
  %s10 = inlined_call_operand.vmem [shape: f32[1,128], index: 10, kind: input, shape index: {}]
  %s11 = inlined_call_operand.hbm [shape: f32[2,128], index: 11, kind: output, shape index: {}]
  %s12 = sld [smem:[#allocation0]]
  $region82: #{tpu_custom_call.1} parent=0
    _
  %s14 = ssub.s32 1, %s12
  %s15 = scalar_select 0, %s14, %s12
  $region1: #{tpu_custom_call.1} parent=0
    #allocation2 [shape = 'u8[1024]{0}', space=vmem, size = 0x400, scoped, tag = 'input window, operand 0, single buffered']
    #allocation3 [shape = 's32[1]{0}', space=sflag, size = 0x4, scoped, tag = 'scoped memory for tpu_custom_call.1']
    #allocation4 [shape = 's32[1]{0}', space=sflag, size = 0x4, scoped, tag = 'scoped memory for tpu_custom_call.1']
    #allocation5 [shape = 'u8[1024]{0}', space=vmem, size = 0x400, scoped, tag = 'input window, operand 1, single buffered']
    #allocation6 [shape = 's32[1]{0}', space=sflag, size = 0x4, scoped, tag = 'scoped memory for tpu_custom_call.1']
    #allocation7 [shape = 'u8[65536]{0}', space=vmem, size = 0x10000, scoped, tag = 'input window, operand 2, single buffered']
    #allocation8 [shape = 'u8[65536]{0}', space=vmem, size = 0x10000, scoped, tag = 'input window, operand 4, single buffered']
    #allocation9 [shape = 's32[1]{0}', space=sflag, size = 0x4, scoped, tag = 'scoped memory for tpu_custom_call.1']
    #allocation10 [shape = 'u8[65536]{0}', space=vmem, size = 0x10000, scoped, tag = 'input window, operand 6, single buffered']
    #allocation11 [shape = 'u8[65536]{0}', space=vmem, size = 0x10000, scoped, tag = 'input window, operand 7, single buffered']
    #allocation12 [shape = 's32[1]{0}', space=sflag, size = 0x4, scoped, tag = 'scoped memory for tpu_custom_call.1']
    #allocation13 [shape = 'u8[65536]{0}', space=vmem, size = 0x10000, scoped, tag = 'input window, operand 9, single buffered']
    #allocation14 [shape = 'u8[1024]{0}', space=vmem, size = 0x400, scoped, tag = 'output window, operand 0, single buffered']
    %16 = vsyncpa [#allocation3], 0
    %17 = vsyncpa [#allocation6], 0
    %18 = vsyncpa [#allocation9], 0
    %19 = vsyncpa [#allocation12], 0
    %20 = vsyncpa [#allocation4], 0
    // Predicated region
    $region2: #{tpu_custom_call.1} parent=1 // pred_check
      _
    $region3: #{tpu_custom_call.1} parent=1 // pred_check_branch
      %22 = sbr.rel (0) target = $region5
    $region4: #{tpu_custom_call.1} parent=1 // pred_region
      %24 = vsyncadd [#allocation3], 0
      %s26 = sshll.u32 %s0, 4
      %s27 = int_to_ptr.hbm [resolvable:$true] %s26
      %s28 = sshll.u32 [#allocation2], 4
      %s29 = int_to_ptr.vmem [resolvable:$true] %s28
      %31 = dma.hbm_to_vmem [thread:$0]  %s27, 32, %s29, [#allocation3]
    $region5: #{tpu_custom_call.1} parent=1 // pred_fallthru
      _
    // Predicated region
    $region6: #{tpu_custom_call.1} parent=1 // pred_check
      _
    $region7: #{tpu_custom_call.1} parent=1 // pred_check_branch
      %33 = sbr.rel (0) target = $region9
    $region8: #{tpu_custom_call.1} parent=1 // pred_region
      %35 = vsyncadd [#allocation6], 0
      %s37 = sshll.u32 %s1, 4
      %s38 = int_to_ptr.hbm [resolvable:$true] %s37
      %s39 = sshll.u32 [#allocation5], 4
      %s40 = int_to_ptr.vmem [resolvable:$true] %s39
      %42 = dma.hbm_to_vmem [thread:$0]  %s38, 32, %s40, [#allocation6]
    $region9: #{tpu_custom_call.1} parent=1 // pred_fallthru
      _
    // Predicated region
    $region10: #{tpu_custom_call.1} parent=1 // pred_check
      _
    $region11: #{tpu_custom_call.1} parent=1 // pred_check_branch
      %44 = sbr.rel (0) target = $region13
    $region12: #{tpu_custom_call.1} parent=1 // pred_region
      %46 = vsyncadd [#allocation6], 0
      %s47 = sshll.u32 %s2, 4
      %s48 = int_to_ptr.hbm [resolvable:$true] %s47
      %s49 = sshll.u32 [#allocation7], 4
      %s50 = int_to_ptr.vmem [resolvable:$true] %s49
      %55 = dma.hbm_to_vmem [thread:$0]  %s48, 2048, %s50, [#allocation6], 128, 128, 8
    $region13: #{tpu_custom_call.1} parent=1 // pred_fallthru
      _
    // Predicated region
    $region14: #{tpu_custom_call.1} parent=1 // pred_check
      _
    $region15: #{tpu_custom_call.1} parent=1 // pred_check_branch
      %57 = sbr.rel (0) target = $region17
    $region16: #{tpu_custom_call.1} parent=1 // pred_region
      _
    $region17: #{tpu_custom_call.1} parent=1 // pred_fallthru
      _
    // Predicated region
    $region18: #{tpu_custom_call.1} parent=1 // pred_check
      _
    $region19: #{tpu_custom_call.1} parent=1 // pred_check_branch
      %59 = sbr.rel (0) target = $region21
    $region20: #{tpu_custom_call.1} parent=1 // pred_region
      %61 = vsyncadd [#allocation9], 0
      %s62 = sshll.u32 %s4, 4
      %s63 = int_to_ptr.hbm [resolvable:$true] %s62
      %s64 = sshll.u32 [#allocation8], 4
      %s65 = int_to_ptr.vmem [resolvable:$true] %s64
      %70 = dma.hbm_to_vmem [thread:$0]  %s63, 2048, %s65, [#allocation9], 128, 128, 8
    $region21: #{tpu_custom_call.1} parent=1 // pred_fallthru
      _
    // Predicated region
    $region22: #{tpu_custom_call.1} parent=1 // pred_check
      _
    $region23: #{tpu_custom_call.1} parent=1 // pred_check_branch
      %72 = sbr.rel (0) target = $region25
    $region24: #{tpu_custom_call.1} parent=1 // pred_region
      _
    $region25: #{tpu_custom_call.1} parent=1 // pred_fallthru
      _
    // Predicated region
    $region26: #{tpu_custom_call.1} parent=1 // pred_check
      _
    $region27: #{tpu_custom_call.1} parent=1 // pred_check_branch
      %74 = sbr.rel (0) target = $region29
    $region28: #{tpu_custom_call.1} parent=1 // pred_region
      %76 = vsyncadd [#allocation9], 0
      %s77 = sshll.u32 %s6, 4
      %s78 = int_to_ptr.hbm [resolvable:$true] %s77
      %s79 = sshll.u32 [#allocation10], 4
      %s80 = int_to_ptr.vmem [resolvable:$true] %s79
      %85 = dma.hbm_to_vmem [thread:$0]  %s78, 2048, %s80, [#allocation9], 128, 128, 8
    $region29: #{tpu_custom_call.1} parent=1 // pred_fallthru
      _
    // Predicated region
    $region30: #{tpu_custom_call.1} parent=1 // pred_check
      _
    $region31: #{tpu_custom_call.1} parent=1 // pred_check_branch
      %87 = sbr.rel (0) target = $region33
    $region32: #{tpu_custom_call.1} parent=1 // pred_region
      %89 = vsyncadd [#allocation12], 0
      %s90 = sshll.u32 %s7, 4
      %s91 = int_to_ptr.hbm [resolvable:$true] %s90
      %s92 = sshll.u32 [#allocation11], 4
      %s93 = int_to_ptr.vmem [resolvable:$true] %s92
      %98 = dma.hbm_to_vmem [thread:$0]  %s91, 2048, %s93, [#allocation12], 128, 128, 8
    $region33: #{tpu_custom_call.1} parent=1 // pred_fallthru
      _
    // Predicated region
    $region34: #{tpu_custom_call.1} parent=1 // pred_check
      _
    $region35: #{tpu_custom_call.1} parent=1 // pred_check_branch
      %100 = sbr.rel (0) target = $region37
    $region36: #{tpu_custom_call.1} parent=1 // pred_region
      _
    $region37: #{tpu_custom_call.1} parent=1 // pred_fallthru
      _
    // Predicated region
    $region38: #{tpu_custom_call.1} parent=1 // pred_check
      _
    $region39: #{tpu_custom_call.1} parent=1 // pred_check_branch
      %102 = sbr.rel (0) target = $region41
    $region40: #{tpu_custom_call.1} parent=1 // pred_region
      %104 = vsyncadd [#allocation12], 0
      %s105 = sshll.u32 %s9, 4
      %s106 = int_to_ptr.hbm [resolvable:$true] %s105
      %s107 = sshll.u32 [#allocation13], 4
      %s108 = int_to_ptr.vmem [resolvable:$true] %s107
      %113 = dma.hbm_to_vmem [thread:$0]  %s106, 2048, %s108, [#allocation12], 128, 128, 8
    $region41: #{tpu_custom_call.1} parent=1 // pred_fallthru
      _
    // Predicated region
    $region42: #{tpu_custom_call.1} parent=1 // pred_check
      _
    $region43: #{tpu_custom_call.1} parent=1 // pred_check_branch
      %115 = sbr.rel (0) target = $region45
    $region44: #{tpu_custom_call.1} parent=1 // pred_region
      _
    $region45: #{tpu_custom_call.1} parent=1 // pred_fallthru
      _
    // Predicated region
    $region46: #{tpu_custom_call.1} parent=1 // pred_check
      _
    $region47: #{tpu_custom_call.1} parent=1 // pred_check_branch
      %117 = sbr.rel (0) target = $region49
    $region48: #{tpu_custom_call.1} parent=1 // pred_region
      %119 = dma.done [#allocation3], 32
    $region49: #{tpu_custom_call.1} parent=1 // pred_fallthru
      _
    // Predicated region
    $region50: #{tpu_custom_call.1} parent=1 // pred_check
      _
    $region51: #{tpu_custom_call.1} parent=1 // pred_check_branch
      %121 = sbr.rel (0) target = $region53
    $region52: #{tpu_custom_call.1} parent=1 // pred_region
      %123 = dma.done [#allocation6], 32
    $region53: #{tpu_custom_call.1} parent=1 // pred_fallthru
      _
    // Predicated region
    $region54: #{tpu_custom_call.1} parent=1 // pred_check
      _
    $region55: #{tpu_custom_call.1} parent=1 // pred_check_branch
      %125 = sbr.rel (0) target = $region57
    $region56: #{tpu_custom_call.1} parent=1 // pred_region
      %127 = dma.done [#allocation6], 2048
    $region57: #{tpu_custom_call.1} parent=1 // pred_fallthru
      _
    // Predicated region
    $region58: #{tpu_custom_call.1} parent=1 // pred_check
      _
    $region59: #{tpu_custom_call.1} parent=1 // pred_check_branch
      %129 = sbr.rel (0) target = $region61
    $region60: #{tpu_custom_call.1} parent=1 // pred_region
      %131 = dma.done [#allocation9], 2048
    $region61: #{tpu_custom_call.1} parent=1 // pred_fallthru
      _
    // Predicated region
    $region62: #{tpu_custom_call.1} parent=1 // pred_check
      _
    $region63: #{tpu_custom_call.1} parent=1 // pred_check_branch
      %133 = sbr.rel (0) target = $region65
    $region64: #{tpu_custom_call.1} parent=1 // pred_region
      %135 = dma.done [#allocation9], 2048
    $region65: #{tpu_custom_call.1} parent=1 // pred_fallthru
      _
    // Predicated region
    $region66: #{tpu_custom_call.1} parent=1 // pred_check
      _
    $region67: #{tpu_custom_call.1} parent=1 // pred_check_branch
      %137 = sbr.rel (0) target = $region69
    $region68: #{tpu_custom_call.1} parent=1 // pred_region
      %139 = dma.done [#allocation12], 2048
    $region69: #{tpu_custom_call.1} parent=1 // pred_fallthru
      _
    // Predicated region
    $region70: #{tpu_custom_call.1} parent=1 // pred_check
      _
    $region71: #{tpu_custom_call.1} parent=1 // pred_check_branch
      %141 = sbr.rel (0) target = $region73
    $region72: #{tpu_custom_call.1} parent=1 // pred_region
      %143 = dma.done [#allocation12], 2048
    $region73: #{tpu_custom_call.1} parent=1 // pred_fallthru
      _
    %v144 = vld [vmem:[#allocation5] sm:$0x3]
    %v145 = vld [vmem:[#allocation2] sm:$0x3]
    %v146 = vld [vmem:[#allocation7] sm:$0xff]
    %v147 = vld [vmem:[#allocation7 + $0x8] sm:$0xff]
    %v148 = vld [vmem:[#allocation7 + $0x10] sm:$0xff]
    %v149 = vld [vmem:[#allocation7 + $0x18] sm:$0xff]
    %v150 = vld [vmem:[#allocation7 + $0x20] sm:$0xff]
    %v151 = vld [vmem:[#allocation7 + $0x28] sm:$0xff]
    %v152 = vld [vmem:[#allocation7 + $0x30] sm:$0xff]
    %v153 = vld [vmem:[#allocation7 + $0x38] sm:$0xff]
    %v154 = vld [vmem:[#allocation7 + $0x40] sm:$0xff]
    %v155 = vld [vmem:[#allocation7 + $0x48] sm:$0xff]
    %v156 = vld [vmem:[#allocation7 + $0x50] sm:$0xff]
    %v157 = vld [vmem:[#allocation7 + $0x58] sm:$0xff]
    %v158 = vld [vmem:[#allocation7 + $0x60] sm:$0xff]
    %v159 = vld [vmem:[#allocation7 + $0x68] sm:$0xff]
    %v160 = vld [vmem:[#allocation7 + $0x70] sm:$0xff]
    %v161 = vld [vmem:[#allocation7 + $0x78] sm:$0xff]
    %v162 = vld [vmem:[%s3] sm:$0x1]
    %v164 = vperm.slane %v162, 0
    %166 = vmatpush.msra.mxu0 %v161
    %167 = vmatpush.msra.mxu0 %v160
    %168 = vmatpush.msra.mxu0 %v159
    %169 = vmatpush.msra.mxu0 %v158
    %170 = vmatpush.msra.mxu0 %v157
    %171 = vmatpush.msra.mxu0 %v156
    %172 = vmatpush.msra.mxu0 %v155
    %173 = vmatpush.msra.mxu0 %v154
    %174 = vmatpush.msra.mxu0 %v153
    %175 = vmatpush.msra.mxu0 %v152
    %176 = vmatpush.msra.mxu0 %v151
    %177 = vmatpush.msra.mxu0 %v150
    %178 = vmatpush.msra.mxu0 %v149
    %179 = vmatpush.msra.mxu0 %v148
    %180 = vmatpush.msra.mxu0 %v147
    %181 = vmatpush.msra.mxu0 %v146
    %182 = vmatmul.f32.gmra.mxu0 %v144
    %v183 = vpop.f32.mrf.mxu0
    %v184 = vadd.f32 %v164, %v183
    %185 = vdwg.mxu0
    %v186 = vmax.f32 %v184, 0.0
    %v187 = vld [vmem:[#allocation8] sm:$0xff]
    %v188 = vld [vmem:[#allocation8 + $0x8] sm:$0xff]
    %v189 = vld [vmem:[#allocation8 + $0x10] sm:$0xff]
    %v190 = vld [vmem:[#allocation8 + $0x18] sm:$0xff]
    %v191 = vld [vmem:[#allocation8 + $0x20] sm:$0xff]
    %v192 = vld [vmem:[#allocation8 + $0x28] sm:$0xff]
    %v193 = vld [vmem:[#allocation8 + $0x30] sm:$0xff]
    %v194 = vld [vmem:[#allocation8 + $0x38] sm:$0xff]
    %v195 = vld [vmem:[#allocation8 + $0x40] sm:$0xff]
    %v196 = vld [vmem:[#allocation8 + $0x48] sm:$0xff]
    %v197 = vld [vmem:[#allocation8 + $0x50] sm:$0xff]
    %v198 = vld [vmem:[#allocation8 + $0x58] sm:$0xff]
    %v199 = vld [vmem:[#allocation8 + $0x60] sm:$0xff]
    %v200 = vld [vmem:[#allocation8 + $0x68] sm:$0xff]
    %v201 = vld [vmem:[#allocation8 + $0x70] sm:$0xff]
    %v202 = vld [vmem:[#allocation8 + $0x78] sm:$0xff]
    %v203 = vld [vmem:[%s5] sm:$0x1]
    %v205 = vperm.slane %v203, 0
    %207 = vmatpush.msra.mxu0 %v202
    %208 = vmatpush.msra.mxu0 %v201
    %209 = vmatpush.msra.mxu0 %v200
    %210 = vmatpush.msra.mxu0 %v199
    %211 = vmatpush.msra.mxu0 %v198
    %212 = vmatpush.msra.mxu0 %v197
    %213 = vmatpush.msra.mxu0 %v196
    %214 = vmatpush.msra.mxu0 %v195
    %215 = vmatpush.msra.mxu0 %v194
    %216 = vmatpush.msra.mxu0 %v193
    %217 = vmatpush.msra.mxu0 %v192
    %218 = vmatpush.msra.mxu0 %v191
    %219 = vmatpush.msra.mxu0 %v190
    %220 = vmatpush.msra.mxu0 %v189
    %221 = vmatpush.msra.mxu0 %v188
    %222 = vmatpush.msra.mxu0 %v187
    %223 = vmatmul.f32.gmra.mxu0 %v186
    %v224 = vpop.f32.mrf.mxu0
    %v225 = vadd.f32 %v205, %v224
    %226 = vdwg.mxu0
    %v227 = vxor.u32 %v225, 2147483648
    %v228 = vmul.f32 %v227, 1.442695
    %v229 = vpow.pop %v228
    %v230 = vadd.f32 %v229, 1.0
    %v231 = vrcp.pop %v230
    %v232 = vmul.f32 %v230, %v231
    %v233 = vsub.f32 1.0, %v232
    %v234 = vmul.f32 %v231, %v233
    %v235 = vadd.f32 %v231, %v234
    %vm236 = vweird.f32 %v230
    %vm237 = vweird.f32 %v231
    %vm238 = vmor %vm236, %vm237
    %v239 = vsel %vm238, %v231, %v235
    %v240 = vand.u32 2147483647, %v230
    %vm241 = vcmp.eq.f32.partialorder %v240, 8.507059e+37
    %v242 = vand.u32 %v230, 2147483648
    %v243 = vor.u32 1.1754944e-38, %v242
    %v244 = vsel %vm241, %v243, %v239
    %v245 = vmul.f32 1.0, %v244
    %v246 = vmul.f32 %v245, %v145
    %v247 = vadd.f32 %v246, %v145
    %v248 = vld [vmem:[#allocation10] sm:$0xff]
    %v249 = vld [vmem:[#allocation10 + $0x8] sm:$0xff]
    %v250 = vld [vmem:[#allocation10 + $0x10] sm:$0xff]
    %v251 = vld [vmem:[#allocation10 + $0x18] sm:$0xff]
    %v252 = vld [vmem:[#allocation10 + $0x20] sm:$0xff]
    %v253 = vld [vmem:[#allocation10 + $0x28] sm:$0xff]
    %v254 = vld [vmem:[#allocation10 + $0x30] sm:$0xff]
    %v255 = vld [vmem:[#allocation10 + $0x38] sm:$0xff]
    %v256 = vld [vmem:[#allocation10 + $0x40] sm:$0xff]
    %v257 = vld [vmem:[#allocation10 + $0x48] sm:$0xff]
    %v258 = vld [vmem:[#allocation10 + $0x50] sm:$0xff]
    %v259 = vld [vmem:[#allocation10 + $0x58] sm:$0xff]
    %v260 = vld [vmem:[#allocation10 + $0x60] sm:$0xff]
    %v261 = vld [vmem:[#allocation10 + $0x68] sm:$0xff]
    %v262 = vld [vmem:[#allocation10 + $0x70] sm:$0xff]
    %v263 = vld [vmem:[#allocation10 + $0x78] sm:$0xff]
    %v264 = vld [vmem:[#allocation11] sm:$0xff]
    %v265 = vld [vmem:[#allocation11 + $0x8] sm:$0xff]
    %v266 = vld [vmem:[#allocation11 + $0x10] sm:$0xff]
    %v267 = vld [vmem:[#allocation11 + $0x18] sm:$0xff]
    %v268 = vld [vmem:[#allocation11 + $0x20] sm:$0xff]
    %v269 = vld [vmem:[#allocation11 + $0x28] sm:$0xff]
    %v270 = vld [vmem:[#allocation11 + $0x30] sm:$0xff]
    %v271 = vld [vmem:[#allocation11 + $0x38] sm:$0xff]
    %v272 = vld [vmem:[#allocation11 + $0x40] sm:$0xff]
    %v273 = vld [vmem:[#allocation11 + $0x48] sm:$0xff]
    %v274 = vld [vmem:[#allocation11 + $0x50] sm:$0xff]
    %v275 = vld [vmem:[#allocation11 + $0x58] sm:$0xff]
    %v276 = vld [vmem:[#allocation11 + $0x60] sm:$0xff]
    %v277 = vld [vmem:[#allocation11 + $0x68] sm:$0xff]
    %v278 = vld [vmem:[#allocation11 + $0x70] sm:$0xff]
    %v279 = vld [vmem:[#allocation11 + $0x78] sm:$0xff]
    %280 = vmatpush.msra.mxu0 %v279
    %281 = vmatpush.msra.mxu0 %v278
    %282 = vmatpush.msra.mxu0 %v277
    %283 = vmatpush.msra.mxu0 %v276
    %284 = vmatpush.msra.mxu0 %v275
    %285 = vmatpush.msra.mxu0 %v274
    %286 = vmatpush.msra.mxu0 %v273
    %287 = vmatpush.msra.mxu0 %v272
    %288 = vmatpush.msra.mxu0 %v271
    %289 = vmatpush.msra.mxu0 %v270
    %290 = vmatpush.msra.mxu0 %v269
    %291 = vmatpush.msra.mxu0 %v268
    %292 = vmatpush.msra.mxu0 %v267
    %293 = vmatpush.msra.mxu0 %v266
    %294 = vmatpush.msra.mxu0 %v265
    %295 = vmatpush.msra.mxu0 %v264
    %296 = vmatmul.f32.gmra.mxu0 %v144
    %v297 = vpop.f32.mrf.mxu0
    %v298 = vadd.f32 0.0, %v297
    %299 = vdwg.mxu0
    %300 = vmatpush.msra.mxu0 %v263
    %301 = vmatpush.msra.mxu0 %v262
    %302 = vmatpush.msra.mxu0 %v261
    %303 = vmatpush.msra.mxu0 %v260
    %304 = vmatpush.msra.mxu0 %v259
    %305 = vmatpush.msra.mxu0 %v258
    %306 = vmatpush.msra.mxu0 %v257
    %307 = vmatpush.msra.mxu0 %v256
    %308 = vmatpush.msra.mxu0 %v255
    %309 = vmatpush.msra.mxu0 %v254
    %310 = vmatpush.msra.mxu0 %v253
    %311 = vmatpush.msra.mxu0 %v252
    %312 = vmatpush.msra.mxu0 %v251
    %313 = vmatpush.msra.mxu0 %v250
    %314 = vmatpush.msra.mxu0 %v249
    %315 = vmatpush.msra.mxu0 %v248
    %316 = vmatmul.f32.gmra.mxu0 %v247
    %v317 = vpop.f32.mrf.mxu0
    %v318 = vadd.f32 %v298, %v317
    %319 = vdwg.mxu0
    %v320 = vld [vmem:[%s8] sm:$0x1]
    %v322 = vperm.slane %v320, 0
    %v324 = vadd.f32 %v318, %v322
    %v325 = vmax.f32 %v324, 0.0
    %v326 = vld [vmem:[#allocation13] sm:$0xff]
    %v327 = vld [vmem:[#allocation13 + $0x8] sm:$0xff]
    %v328 = vld [vmem:[#allocation13 + $0x10] sm:$0xff]
    %v329 = vld [vmem:[#allocation13 + $0x18] sm:$0xff]
    %v330 = vld [vmem:[#allocation13 + $0x20] sm:$0xff]
    %v331 = vld [vmem:[#allocation13 + $0x28] sm:$0xff]
    %v332 = vld [vmem:[#allocation13 + $0x30] sm:$0xff]
    %v333 = vld [vmem:[#allocation13 + $0x38] sm:$0xff]
    %v334 = vld [vmem:[#allocation13 + $0x40] sm:$0xff]
    %v335 = vld [vmem:[#allocation13 + $0x48] sm:$0xff]
    %v336 = vld [vmem:[#allocation13 + $0x50] sm:$0xff]
    %v337 = vld [vmem:[#allocation13 + $0x58] sm:$0xff]
    %v338 = vld [vmem:[#allocation13 + $0x60] sm:$0xff]
    %v339 = vld [vmem:[#allocation13 + $0x68] sm:$0xff]
    %v340 = vld [vmem:[#allocation13 + $0x70] sm:$0xff]
    %v341 = vld [vmem:[#allocation13 + $0x78] sm:$0xff]
    %v342 = vld [vmem:[%s10] sm:$0x1]
    %v344 = vperm.slane %v342, 0
    %346 = vmatpush.msra.mxu0 %v341
    %347 = vmatpush.msra.mxu0 %v340
    %348 = vmatpush.msra.mxu0 %v339
    %349 = vmatpush.msra.mxu0 %v338
    %350 = vmatpush.msra.mxu0 %v337
    %351 = vmatpush.msra.mxu0 %v336
    %352 = vmatpush.msra.mxu0 %v335
    %353 = vmatpush.msra.mxu0 %v334
    %354 = vmatpush.msra.mxu0 %v333
    %355 = vmatpush.msra.mxu0 %v332
    %356 = vmatpush.msra.mxu0 %v331
    %357 = vmatpush.msra.mxu0 %v330
    %358 = vmatpush.msra.mxu0 %v329
    %359 = vmatpush.msra.mxu0 %v328
    %360 = vmatpush.msra.mxu0 %v327
    %361 = vmatpush.msra.mxu0 %v326
    %362 = vmatmul.f32.gmra.mxu0 %v325
    %v363 = vpop.f32.mrf.mxu0
    %v364 = vadd.f32 %v344, %v363
    %365 = vdwg.mxu0
    %366 = vst [vmem:[#allocation14] sm:$0x3] %v364
    // Predicated region
    $region74: #{tpu_custom_call.1} parent=1 // pred_check
      _
    $region75: #{tpu_custom_call.1} parent=1 // pred_check_branch
      %368 = sbr.rel (0) target = $region77
    $region76: #{tpu_custom_call.1} parent=1 // pred_region
      %370 = vsyncadd [#allocation4], 0
      %s372 = sshll.u32 [#allocation14], 4
      %s373 = int_to_ptr.vmem [resolvable:$true] %s372
      %s374 = sshll.u32 %s11, 4
      %s375 = int_to_ptr.hbm [resolvable:$true] %s374
      %377 = dma.vmem_to_hbm [thread:$0]  %s373, 32, %s375, [#allocation4]
    $region77: #{tpu_custom_call.1} parent=1 // pred_fallthru
      _
    // Predicated region
    $region78: #{tpu_custom_call.1} parent=1 // pred_check
      _
    $region79: #{tpu_custom_call.1} parent=1 // pred_check_branch
      %379 = sbr.rel (0) target = $region81
    $region80: #{tpu_custom_call.1} parent=1 // pred_region
      %381 = dma.done [#allocation4], 32
    $region81: #{tpu_custom_call.1} parent=1 // pred_fallthru
      _
    %382 = vsyncpa [#allocation3], 1
    %383 = vsyncpa [#allocation6], 1
    %384 = vsyncpa [#allocation9], 1
    %385 = vsyncpa [#allocation12], 1
    %386 = vsyncpa [#allocation4], 1

</llo_original>
